<compile_context>
chip_gen: v7x
topology: tpu7x:2x2x1
jax: 0.10.0
libtpu: 0.0.40
codegen_flags: <defaults>
</compile_context>

<pallas_src>
import jax
import jax.numpy as jnp
from jax import lax
from jax.experimental import pallas as pl
from jax.experimental.pallas import tpu as pltpu


def _round_up(v, m):
    return ((v + m - 1) // m) * m


# Contract x:(tm, tk) with W:(tn, tk) over K -> (tm, tn); no transpose needed.
_CONTRACT_K = (((1,), (1,)), ((), ()))


def _linear_kernel_inplace(x_ref, w_ref, b_ref, o_ref):
    """f32 output: accumulate straight into the resident output tile."""
    k = pl.program_id(2)

    @pl.when(k == 0)
    def _():
        o_ref[...] = jnp.broadcast_to(b_ref[...].astype(o_ref.dtype), o_ref.shape)

    o_ref[...] += lax.dot_general(
        x_ref[...], w_ref[...],
        dimension_numbers=_CONTRACT_K,
        preferred_element_type=jnp.float32,
    )


def _linear_kernel_scratch(x_ref, w_ref, b_ref, o_ref, acc_ref):
    """Non-f32 output: accumulate in f32 VMEM scratch, cast once at the end."""
    k = pl.program_id(2)

    @pl.when(k == 0)
    def _():
        acc_ref[...] = jnp.broadcast_to(b_ref[...].astype(jnp.float32), acc_ref.shape)

    acc_ref[...] += lax.dot_general(
        x_ref[...], w_ref[...],
        dimension_numbers=_CONTRACT_K,
        preferred_element_type=jnp.float32,
    )

    @pl.when(k == pl.num_programs(2) - 1)
    def _():
        o_ref[...] = acc_ref[...].astype(o_ref.dtype)


def _pick_tile(dim, target, granularity):
    """Largest useful tile <= target that minimizes padding.

    If the whole dim fits in one tile, use the full dim (a block dim equal to
    the full array dim is legal even when unaligned -> zero padding).
    Otherwise split into the fewest blocks of size <= target and round that
    block up to the hardware granularity (8 sublanes / 128 lanes).
    """
    if dim <= target:
        return dim
    n_blocks = -(-dim // target)
    return _round_up(-(-dim // n_blocks), granularity)


def _m_axis_semantics(grid_m):
    """Real 2-TensorCore sharding of the M axis on v7x; PARALLEL elsewhere."""
    try:
        kind = jax.devices()[0].device_kind.lower()
    except Exception:  # pragma: no cover
        kind = ""
    if ("v7" in kind or "tpu7" in kind) and grid_m % 2 == 0:
        return pltpu.CORE_PARALLEL
    return pltpu.PARALLEL


def linear_forward(x, W, b, *, tm=512, tn=512, tk=512, compute_dtype=None):
    """PyTorch Linear forward: addmm(b, x.view(-1, K), W.T).

    x: (B, S, K); W: (H, K); b: (H,)  ->  (B*S, H)
    """
    B, S, K = x.shape
    H, Kw = W.shape
    assert Kw == K, (Kw, K)
    M = B * S

    out_dtype = jnp.result_type(x.dtype, W.dtype)

    x2d = x.reshape(M, K)          # glue reshape: x.view(-1, x.size(2))
    w2d = W                        # native (H, K); contracted on K in-kernel
    b2d = b.reshape(1, H)

    if compute_dtype is not None:  # opt-in lower-precision operands
        x2d = x2d.astype(compute_dtype)
        w2d = w2d.astype(compute_dtype)

    # Tile selection: no padding for small dims, minimal padding otherwise.
    tm = _pick_tile(M, tm, 8)
    tn = _pick_tile(H, tn, 128)    # lane-dense output along H
    tk = _pick_tile(K, tk, 128)    # large tk also cuts accumulator traffic

    Mp, Kp, Hp = _round_up(M, tm), _round_up(K, tk), _round_up(H, tn)

    # TODO(synk): for repeated inference, hoist the W / b padding to
    # weight-prep time so it costs zero per call (no transpose is needed).
    if (Mp, Kp) != (M, K):
        x2d = jnp.pad(x2d, ((0, Mp - M), (0, Kp - K)))
    if (Hp, Kp) != (H, K):
        w2d = jnp.pad(w2d, ((0, Hp - H), (0, Kp - K)))
    if Hp != H:
        b2d = jnp.pad(b2d, ((0, 0), (0, Hp - H)))

    grid = (Mp // tm, Hp // tn, Kp // tk)
    grid_m, grid_n, grid_k = grid

    in_isz = jnp.dtype(x2d.dtype).itemsize
    w_isz = jnp.dtype(w2d.dtype).itemsize
    b_isz = jnp.dtype(b2d.dtype).itemsize
    out_isz = jnp.dtype(out_dtype).itemsize

    use_scratch = jnp.dtype(out_dtype) != jnp.dtype(jnp.float32)
    kernel = _linear_kernel_scratch if use_scratch else _linear_kernel_inplace
    scratch_shapes = [pltpu.VMEM((tm, tn), jnp.float32)] if use_scratch else []

    # Scoped-VMEM budget for the chosen tiles (double-buffered in/out blocks),
    # with headroom; capped at 64 MiB so it is valid on v7x physical VMEM.
    vmem_need = (2 * tm * tk * in_isz + 2 * tn * tk * w_isz
                 + 2 * tm * tn * out_isz + 2 * tn * b_isz)
    if use_scratch:
        vmem_need += tm * tn * 4
    vmem_limit = min(max(int(vmem_need * 1.25) + (4 << 20), 16 << 20), 64 << 20)

    cost = pl.CostEstimate(
        flops=2 * Mp * Kp * Hp,
        transcendentals=0,
        # x is streamed once per N tile, W once per M tile under this grid.
        bytes_accessed=(grid_n * Mp * Kp * in_isz + grid_m * Hp * Kp * w_isz
                        + Mp * Hp * out_isz + grid_m * Hp * b_isz),
    )

    out = pl.pallas_call(
        kernel,
        out_shape=jax.ShapeDtypeStruct((Mp, Hp), out_dtype),
        grid_spec=pltpu.PrefetchScalarGridSpec(
            num_scalar_prefetch=0,
            grid=grid,
            in_specs=[
                pl.BlockSpec((tm, tk), lambda i, j, k: (i, k)),   # x tile
                pl.BlockSpec((tn, tk), lambda i, j, k: (j, k)),   # W tile (H,K)
                pl.BlockSpec((1, tn), lambda i, j, k: (0, j)),    # bias tile
            ],
            out_specs=pl.BlockSpec((tm, tn), lambda i, j, k: (i, j)),
            scratch_shapes=scratch_shapes,
        ),
        compiler_params=pltpu.CompilerParams(
            dimension_semantics=(_m_axis_semantics(grid_m),
                                 pltpu.PARALLEL,
                                 pltpu.ARBITRARY),
            vmem_limit_bytes=vmem_limit,
        ),
        cost_estimate=cost,
    )(x2d, w2d, b2d)

    if (Mp, Hp) != (M, H):
        out = out[:M, :H]
    return out


if __name__ == "__main__":
    key = jax.random.PRNGKey(0)

    # --- Test 1: module-scale shapes (single tile, no-pad fast path). ------
    B, S, K, H = 2, 8, 32, 64
    k1, k2, k3, key = jax.random.split(key, 4)
    x = jax.random.normal(k1, (B, S, K), dtype=jnp.float32)
    W = jax.random.normal(k2, (H, K), dtype=jnp.float32) * 0.05
    b = jax.random.normal(k3, (H,), dtype=jnp.float32) * 0.01

    z = linear_forward(x, W, b)
    jax.block_until_ready(z)
    z_ref = jnp.einsum("mk,hk->mh", x.reshape(-1, K), W,
                       precision=jax.lax.Precision.HIGHEST) + b
    assert z.shape == (B * S, H), z.shape
    assert jnp.allclose(z, z_ref, atol=1e-3, rtol=1e-3)

    # --- Test 2: multi-tile grid with padding on every axis (f32 path). ----
    B, S, K, H = 4, 5, 200, 300          # M=20; forces pad + slice + multi-k
    k1, k2, k3, key = jax.random.split(key, 4)
    x = jax.random.normal(k1, (B, S, K), dtype=jnp.float32)
    W = jax.random.normal(k2, (H, K), dtype=jnp.float32) * 0.05
    b = jax.random.normal(k3, (H,), dtype=jnp.float32) * 0.01

    z = linear_forward(x, W, b, tm=8, tn=128, tk=128)
    jax.block_until_ready(z)
    z_ref = jnp.einsum("mk,hk->mh", x.reshape(-1, K), W,
                       precision=jax.lax.Precision.HIGHEST) + b
    assert z.shape == (B * S, H), z.shape
    assert jnp.allclose(z, z_ref, atol=1e-3, rtol=1e-3)

    # --- Test 3: bf16 operands/output (f32-scratch accumulation path). -----
    B, S, K, H = 2, 16, 256, 256
    k1, k2, k3, key = jax.random.split(key, 4)
    x = jax.random.normal(k1, (B, S, K), dtype=jnp.float32).astype(jnp.bfloat16)
    W = (jax.random.normal(k2, (H, K), dtype=jnp.float32) * 0.05).astype(jnp.bfloat16)
    b = (jax.random.normal(k3, (H,), dtype=jnp.float32) * 0.01).astype(jnp.bfloat16)

    z = linear_forward(x, W, b, tm=16, tn=128, tk=128)
    jax.block_until_ready(z)
    z_ref = (jnp.einsum("mk,hk->mh",
                        x.reshape(-1, K).astype(jnp.float32),
                        W.astype(jnp.float32),
                        precision=jax.lax.Precision.HIGHEST)
             + b.astype(jnp.float32))
    assert z.shape == (B * S, H), z.shape
    assert jnp.allclose(z.astype(jnp.float32), z_ref, atol=3e-2, rtol=3e-2)

    print("KERNEL_OK")
</pallas_src>

<mosaic_0001>
module attributes {stable_mosaic.version = 11 : i64} {
  func.func @_linear_kernel_inplace(%arg0: i32, %arg1: i32, %arg2: i32, %arg3: memref<16x32xf32, #tpu.memory_space<vmem>>, %arg4: memref<64x32xf32, #tpu.memory_space<vmem>>, %arg5: memref<1x64xf32, #tpu.memory_space<vmem>>, %arg6: memref<16x64xf32, #tpu.memory_space<vmem>>) attributes {dimension_semantics = [#tpu.dimension_semantics<parallel>, #tpu.dimension_semantics<parallel>, #tpu.dimension_semantics<arbitrary>], iteration_bounds = array<i64: 1, 1, 1>, scalar_prefetch = 0 : i64, scratch_operands = 0 : i64, tpu.core_type = #tpu.core_type<tc>, window_params = [{transform_indices = @transform_0, window_bounds = array<i64: 16, 32>}, {transform_indices = @transform_1, window_bounds = array<i64: 64, 32>}, {transform_indices = @transform_2, window_bounds = array<i64: 1, 64>}, {transform_indices = @transform_3, window_bounds = array<i64: 16, 64>}]} {
    %c0_i32 = arith.constant 0 : i32
    %0 = arith.cmpi eq, %arg2, %c0_i32 : i32
    %1 = arith.extui %0 : i1 to i32
    %c0_i32_0 = arith.constant 0 : i32
    %2 = arith.cmpi ne, %1, %c0_i32_0 : i32
    scf.if %2 {
      %c0_8 = arith.constant 0 : index
      %c0_9 = arith.constant 0 : index
      %9 = vector.load %arg5[%c0_8, %c0_9] : memref<1x64xf32, #tpu.memory_space<vmem>>, vector<1x64xf32>
      %10 = vector.shape_cast %9 : vector<1x64xf32> to vector<1x64xf32>
      %11 = vector.broadcast %10 : vector<1x64xf32> to vector<16x64xf32>
      %c0_10 = arith.constant 0 : index
      %c0_11 = arith.constant 0 : index
      %12 = vector.load %arg6[%c0_10, %c0_11] : memref<16x64xf32, #tpu.memory_space<vmem>>, vector<16x64xf32>
      tpu.vector_store %arg6[%c0_10, %c0_11], %11 {strides = array<i32>} : memref<16x64xf32, #tpu.memory_space<vmem>>, vector<16x64xf32>,
    } else {
    }
    %c0 = arith.constant 0 : index
    %c0_1 = arith.constant 0 : index
    %3 = vector.load %arg6[%c0, %c0_1] : memref<16x64xf32, #tpu.memory_space<vmem>>, vector<16x64xf32>
    %c0_2 = arith.constant 0 : index
    %c0_3 = arith.constant 0 : index
    %4 = vector.load %arg3[%c0_2, %c0_3] : memref<16x32xf32, #tpu.memory_space<vmem>>, vector<16x32xf32>
    %c0_4 = arith.constant 0 : index
    %c0_5 = arith.constant 0 : index
    %5 = vector.load %arg4[%c0_4, %c0_5] : memref<64x32xf32, #tpu.memory_space<vmem>>, vector<64x32xf32>
    %cst = arith.constant dense<0.000000e+00> : vector<16x64xf32>
    %6 = tpu.matmul %4, %5, %cst {dimension_numbers = #tpu.dot_dimension_numbers<[1], [1], [0], [0], [0, 0, 1, 0], [], []>} : vector<16x32xf32>, vector<64x32xf32>, vector<16x64xf32> -> vector<16x64xf32>
    %7 = arith.addf %3, %6 : vector<16x64xf32>
    %c0_6 = arith.constant 0 : index
    %c0_7 = arith.constant 0 : index
    %8 = vector.load %arg6[%c0_6, %c0_7] : memref<16x64xf32, #tpu.memory_space<vmem>>, vector<16x64xf32>
    tpu.vector_store %arg6[%c0_6, %c0_7], %7 {strides = array<i32>} : memref<16x64xf32, #tpu.memory_space<vmem>>, vector<16x64xf32>,
    return
  }
  func.func @transform_0(%arg0: i32, %arg1: i32, %arg2: i32) -> (i32, i32) {
    %c0_i32 = arith.constant 0 : i32
    return %arg0, %arg2 : i32, i32
  }
  func.func @transform_1(%arg0: i32, %arg1: i32, %arg2: i32) -> (i32, i32) {
    %c0_i32 = arith.constant 0 : i32
    return %arg1, %arg2 : i32, i32
  }
  func.func @transform_2(%arg0: i32, %arg1: i32, %arg2: i32) -> (i32, i32) {
    %c0_i32 = arith.constant 0 : i32
    %c0_i32_0 = arith.constant 0 : i32
    return %c0_i32, %arg1 : i32, i32
  }
  func.func @transform_3(%arg0: i32, %arg1: i32, %arg2: i32) -> (i32, i32) {
    %c0_i32 = arith.constant 0 : i32
    return %arg0, %arg1 : i32, i32
  }
}

</mosaic_0001>

<llo_original>
// kernel: tpu_custom_call.1
$region0: #{tpu_custom_call.1}
  #allocation0 [shape = 'u32[]', space=smem, size = 0x4, offset = 0x4, fixed_abs, tag = 'smem constant byte address 0x4 - core index']
  #allocation1 [shape = 'u32[144,128]{1,0:T(1,128)}', space=vmem, size = 0x12000, scoped, tag = 'internal scratch']
  %s0 = inlined_call_operand.vmem [shape: f32[16,32], index: 0, kind: input, shape index: {}]
  %s1 = inlined_call_operand.vmem [shape: f32[64,32], index: 1, kind: input, shape index: {}]
  %s2 = inlined_call_operand.vmem [shape: f32[1,64], index: 2, kind: input, shape index: {}]
  %s3 = inlined_call_operand.hbm [shape: f32[16,64], index: 3, kind: output, shape index: {}]
  %s4 = sld [smem:[#allocation0]]
  $region26: #{tpu_custom_call.1} parent=0
    _
  %s6 = ssub.s32 1, %s4
  %s7 = scalar_select 0, %s6, %s4
  $region1: #{tpu_custom_call.1} parent=0
    #allocation2 [shape = 'u8[8192]{0}', space=vmem, size = 0x2000, scoped, tag = 'output window, operand 0, single buffered']
    #allocation3 [shape = 's32[1]{0}', space=sflag, size = 0x4, scoped, tag = 'scoped memory for tpu_custom_call.1']
    %8 = vsyncpa [#allocation3], 0
    // Predicated region
    $region2: #{tpu_custom_call.1} parent=1 // pred_check
      _
    $region3: #{tpu_custom_call.1} parent=1 // pred_check_branch
      %10 = sbr.rel (0) target = $region5
    $region4: #{tpu_custom_call.1} parent=1 // pred_region
      _
    $region5: #{tpu_custom_call.1} parent=1 // pred_fallthru
      _
    // Predicated region
    $region6: #{tpu_custom_call.1} parent=1 // pred_check
      _
    $region7: #{tpu_custom_call.1} parent=1 // pred_check_branch
      %12 = sbr.rel (0) target = $region9
    $region8: #{tpu_custom_call.1} parent=1 // pred_region
      _
    $region9: #{tpu_custom_call.1} parent=1 // pred_fallthru
      _
    // Predicated region
    $region10: #{tpu_custom_call.1} parent=1 // pred_check
      _
    $region11: #{tpu_custom_call.1} parent=1 // pred_check_branch
      %14 = sbr.rel (0) target = $region13
    $region12: #{tpu_custom_call.1} parent=1 // pred_region
      _
    $region13: #{tpu_custom_call.1} parent=1 // pred_fallthru
      _
    %p15 = scmp.eq.s32.totalorder 0, 0
    // Predicated region
    $region14: #{tpu_custom_call.1} parent=1 // pred_check
      %p16 = pneg %p15
    $region15: #{tpu_custom_call.1} parent=1 // pred_check_branch
      %18 = sbr.rel (%p16) target = $region17
    $region16: #{tpu_custom_call.1} parent=1 // pred_region
      %v19 = vld [vmem:[%s2] sm:$0x1]
      %v21 = vlaneseq
      %v22 = vshrl.u32 %v21, 7
      %v23 = vsub.s32 0, %v22
      %v24 = vrot.slane %v19, %v23
      %vm26 = vcmask 523264
      %27 = vst.msk [vmem:[#allocation2] sm:$0xff] %vm26, %v24
      %28 = vst.msk [vmem:[#allocation2 + $0x8] sm:$0xff] %vm26, %v24
    $region17: #{tpu_custom_call.1} parent=1 // pred_fallthru
      _
    %v29 = vld [vmem:[#allocation2] sm:$0xff]
    %v30 = vld [vmem:[#allocation2 + $0x8] sm:$0xff]
    %v31 = vld [vmem:[%s0] sm:$0xff]
    %v32 = vld [vmem:[%s0 + $0x8] sm:$0xff]
    %v33 = vld [vmem:[%s1] sm:$0xff]
    %v34 = vld [vmem:[%s1 + $0x8] sm:$0xff]
    %v35 = vld [vmem:[%s1 + $0x10] sm:$0xff]
    %v36 = vld [vmem:[%s1 + $0x18] sm:$0xff]
    %v37 = vld [vmem:[%s1 + $0x20] sm:$0xff]
    %v38 = vld [vmem:[%s1 + $0x28] sm:$0xff]
    %v39 = vld [vmem:[%s1 + $0x30] sm:$0xff]
    %v40 = vld [vmem:[%s1 + $0x38] sm:$0xff]
    %vm41 = vcmask 261120
    %v43 = vsel %vm41, %v31, 0
    %v46 = vsel %vm41, %v32, 0
    %v49 = vsel %vm41, %v33, 0
    %v52 = vsel %vm41, %v34, 0
    %v55 = vsel %vm41, %v35, 0
    %v58 = vsel %vm41, %v36, 0
    %v61 = vsel %vm41, %v37, 0
    %v64 = vsel %vm41, %v38, 0
    %v67 = vsel %vm41, %v39, 0
    %v70 = vsel %vm41, %v40, 0
    %72 = vmatprep.subr.mxu0 0.0
    %73 = vmatpush1.xpose.msra.mxu0 %v49
    %74 = vmatprep.subr.mxu0 0.0
    %75 = vmatpush1.xpose.msra.mxu0 %v52
    %76 = vmatprep.subr.mxu0 0.0
    %77 = vmatpush1.xpose.msra.mxu0 %v55
    %78 = vmatprep.subr.mxu0 0.0
    %79 = vmatpush1.xpose.msra.mxu0 %v58
    %80 = vmatprep.subr.mxu0 0.0
    %81 = vmatpush1.xpose.msra.mxu0 %v61
    %82 = vmatprep.subr.mxu0 0.0
    %83 = vmatpush1.xpose.msra.mxu0 %v64
    %84 = vmatprep.subr.mxu0 0.0
    %85 = vmatpush1.xpose.msra.mxu0 %v67
    %86 = vmatprep.subr.mxu0 0.0
    %87 = vmatpush1.xpose.msra.mxu0 %v70
    %88 = vmatprep.subr.mxu0 0.0
    %89 = vmatpush1.xpose.msra.mxu0 0.0
    %90 = vmatprep.subr.mxu0 0.0
    %91 = vmatpush1.xpose.msra.mxu0 0.0
    %92 = vmatprep.subr.mxu0 0.0
    %93 = vmatpush1.xpose.msra.mxu0 0.0
    %94 = vmatprep.subr.mxu0 0.0
    %95 = vmatpush1.xpose.msra.mxu0 0.0
    %96 = vmatprep.subr.mxu0 0.0
    %97 = vmatpush1.xpose.msra.mxu0 0.0
    %98 = vmatprep.subr.mxu0 0.0
    %99 = vmatpush1.xpose.msra.mxu0 0.0
    %100 = vmatprep.subr.mxu0 0.0
    %101 = vmatpush1.xpose.msra.mxu0 0.0
    %102 = vmatprep.subr.mxu0 0.0
    %103 = vmatpush1.xpose.msra.mxu0 0.0
    %104 = vmatprep.subr.mxu0 0.0
    %105 = vmatpush1.xpose.msra.mxu0 0.0
    %106 = vmatprep.subr.mxu0 0.0
    %107 = vmatpush1.xpose.msra.mxu0 0.0
    %108 = vmatprep.subr.mxu0 0.0
    %109 = vmatpush1.xpose.msra.mxu0 0.0
    %110 = vmatprep.subr.mxu0 0.0
    %111 = vmatpush1.xpose.msra.mxu0 0.0
    %112 = vmatprep.subr.mxu0 0.0
    %113 = vmatpush1.xpose.msra.mxu0 0.0
    %114 = vmatprep.subr.mxu0 0.0
    %115 = vmatpush1.xpose.msra.mxu0 0.0
    %116 = vmatprep.subr.mxu0 0.0
    %117 = vmatpush1.xpose.msra.mxu0 0.0
    %118 = vmatprep.subr.mxu0 0.0
    %119 = vmatpush1.xpose.msra.mxu0 0.0
    %120 = vmatprep.subr.mxu0 0.0
    %121 = vmatpush1.xpose.msra.mxu0 0.0
    %122 = vmatprep.subr.mxu0 0.0
    %123 = vmatpush1.xpose.msra.mxu0 0.0
    %124 = vmatprep.subr.mxu0 0.0
    %125 = vmatpush1.xpose.msra.mxu0 0.0
    %126 = vmatprep.subr.mxu0 0.0
    %127 = vmatpush1.xpose.msra.mxu0 0.0
    %128 = vmatprep.subr.mxu0 0.0
    %129 = vmatpush1.xpose.msra.mxu0 0.0
    %130 = vmatprep.subr.mxu0 0.0
    %131 = vmatpush1.xpose.msra.mxu0 0.0
    %132 = vmatprep.subr.mxu0 0.0
    %133 = vmatpush1.xpose.msra.mxu0 0.0
    %134 = vmatprep.subr.mxu0 0.0
    %135 = vmatpush1.xpose.msra.mxu0 0.0
    %136 = vmatprep.mubr.f32.mxu0 0.0
    %137 = vmatmul.mubr.f32.gmra.mrb[0].mxu0 %v43
    %v138 = vpop.f32.mrb[0].mxu0
    %v139 = vadd.f32 0.0, %v138
    %v140 = vpop.f32.mrb[0].mxu0
    %141 = vmatprep.mubr.f32.mxu0 0.0
    %142 = vmatmul.mubr.f32.gmra.mrb[0].mxu0 %v46
    %v143 = vpop.f32.mrb[0].mxu0
    %v144 = vadd.f32 0.0, %v143
    %v145 = vpop.f32.mrb[0].mxu0
    %146 = vdwg.mxu0
    %v147 = vadd.f32 %v29, %v139
    %v148 = vadd.f32 %v30, %v144
    %vm149 = vcmask 523264
    %150 = vst.msk [vmem:[#allocation2] sm:$0xff] %vm149, %v147
    %151 = vst.msk [vmem:[#allocation2 + $0x8] sm:$0xff] %vm149, %v148
    // Predicated region
    $region18: #{tpu_custom_call.1} parent=1 // pred_check
      _
    $region19: #{tpu_custom_call.1} parent=1 // pred_check_branch
      %153 = sbr.rel (0) target = $region21
    $region20: #{tpu_custom_call.1} parent=1 // pred_region
      %s155 = ssub.s32 256, 256
      %156 = vsyncadd [#allocation3], %s155
      %s157 = sshll.u32 [#allocation2], 4
      %s158 = int_to_ptr.vmem [resolvable:$true] %s157
      %163 = dma.vmem_to_hbm [thread:$0]  %s158, 256, %s3, [#allocation3], 128, 128, 8
    $region21: #{tpu_custom_call.1} parent=1 // pred_fallthru
      _
    // Predicated region
    $region22: #{tpu_custom_call.1} parent=1 // pred_check
      _
    $region23: #{tpu_custom_call.1} parent=1 // pred_check_branch
      %165 = sbr.rel (0) target = $region25
    $region24: #{tpu_custom_call.1} parent=1 // pred_region
      %166 = dma.done [#allocation3], 256
    $region25: #{tpu_custom_call.1} parent=1 // pred_fallthru
      _
    %167 = vsyncpa [#allocation3], 1

</llo_original>
